<compile_context>
chip_gen: v7x
topology: tpu7x:2x2x1
jax: 0.10.0
libtpu: 0.0.40
codegen_flags: <defaults>
</compile_context>

<pallas_src>
import functools

import jax
import jax.numpy as jnp
import numpy as np
from jax import lax
from jax.experimental import pallas as pl
from jax.experimental.pallas import tpu as pltpu

# ---------------------------------------------------------------------------
# Constants (small spatial size; the original module uses 100x100 => fc1
# in_features = 8*100*100).
# ---------------------------------------------------------------------------
EPS = 1e-5
H = W = 16                   # spatial size
HW = H * W                   # 256
N = 2                        # batch per branch
R_B = N * HW                 # 512 lanes per branch
R = 2 * R_B                  # 1024 lanes: flattened (branch, n, i, j)
C1, C2, C3 = 4, 8, 8         # conv output channels
HID_RAW = 500                # PyTorch hidden size
HID = 512                    # zero-padded hidden (lane-dense)
OUT = 5
OUTP = 128                   # zero-padded fc3 output (lane-dense)
CHUNK_C = 4                  # conv3 channels folded per fc1 K-grid step
K_STEPS = C3 // CHUNK_C      # 2
KCHUNK = CHUNK_C * HW        # 1024 fc1 K rows per grid step
ROWS = 8                     # sublane-padded batch rows for the MLP (2*N -> 8)


# ---------------------------------------------------------------------------
# In-kernel helpers
# ---------------------------------------------------------------------------
def _reflect_taps(a, masks, roll_sign):
    """a: (Cin, R) activation, lanes flattened as (branch, n, i, j).

    Returns (9*Cin, R): the 3x3 ReflectionPad2d(1) taps, row order
    ((kh, kw), ci), built from boundary-masked lane rotations (XLU).  Rolls
    are hoisted: 2 row rolls + 2 column rolls per row => 8 rolls per layer.
    """
    i0, il, j0, jl = masks                      # each (1, R) bool

    def rl(x, s):
        # jnp.roll-by-s semantics, robust to either rotation sign convention.
        return pltpu.roll(x, (roll_sign * s) % R, axis=1)

    a_up = rl(a, W)     # value at row i-1
    a_dn = rl(a, -W)    # value at row i+1
    rows = (
        jnp.where(i0, a_dn, a_up),   # dh = -1 (reflect at i == 0)
        a,                           # dh = 0
        jnp.where(il, a_up, a_dn),   # dh = +1 (reflect at i == H-1)
    )
    taps = []
    for b in rows:
        b_l = rl(b, 1)    # value at column j-1
        b_r = rl(b, -1)   # value at column j+1
        taps.append(jnp.where(j0, b_r, b_l))   # dw = -1
        taps.append(b)                         # dw = 0
        taps.append(jnp.where(jl, b_l, b_r))   # dw = +1
    return jnp.concatenate(taps, axis=0)       # (9*Cin, R)


def _conv_bn(a, wm, b, g, be, masks, bmask0, roll_sign):
    """3x3 reflect-pad conv + bias + ReLU + training-mode BatchNorm (fused).

    a  : (Cin, R) lane-dense activation (both branches)
    wm : (Cout, 9*Cin) conv weight, columns ordered ((kh, kw), ci)
    b/g/be : (Cout, 1)
    BatchNorm stats are computed PER BRANCH over its own N*H*W lane half.
    """
    taps = _reflect_taps(a, masks, roll_sign)                       # (9Cin, R)
    y = jnp.dot(wm, taps, preferred_element_type=jnp.float32)       # (Cout, R)
    y = jnp.maximum(y + b, 0.0)                                     # bias+ReLU

    inv_rb = 1.0 / float(R_B)
    yy = y * y
    s1_all = jnp.sum(y, axis=1, keepdims=True)
    s1_b0 = jnp.sum(jnp.where(bmask0, y, 0.0), axis=1, keepdims=True)
    s1_b1 = s1_all - s1_b0
    s2_all = jnp.sum(yy, axis=1, keepdims=True)
    s2_b0 = jnp.sum(jnp.where(bmask0, yy, 0.0), axis=1, keepdims=True)
    s2_b1 = s2_all - s2_b0

    m0 = s1_b0 * inv_rb
    v0 = jnp.maximum(s2_b0 * inv_rb - m0 * m0, 0.0)
    m1 = s1_b1 * inv_rb
    v1 = jnp.maximum(s2_b1 * inv_rb - m1 * m1, 0.0)

    mean = jnp.where(bmask0, m0, m1)                                # (Cout, R)
    inv = jnp.where(bmask0, lax.rsqrt(v0 + EPS), lax.rsqrt(v1 + EPS))
    y = (y - mean) * inv
    return g * y + be


# ---------------------------------------------------------------------------
# Fused kernel: convs + flatten + MLP with fc1 K-streaming.  grid = (K_STEPS,)
# ---------------------------------------------------------------------------
def siamese_kernel(x_ref, convw_ref, smallp_ref, w1k_ref, fcb_ref, w2f_ref,
                   w3f_ref, o_ref, y3_s, acc_s, *, roll_sign):
    k = pl.program_id(0)

    @pl.when(k == 0)
    def _convs_and_flatten():
        # Boundary / branch masks, built once for all three conv layers.
        idx = lax.broadcasted_iota(jnp.int32, (1, R), 1)
        jj = idx % W
        ii = (idx // W) % H
        masks = (ii == 0, ii == H - 1, jj == 0, jj == W - 1)
        bmask0 = idx < R_B                       # branch-0 lane half

        # Packed small parameters: (56, 1), param j at rows [8j, 8j+Cout).
        b1c = smallp_ref[0:C1, :]
        g1 = smallp_ref[8:8 + C1, :]
        be1 = smallp_ref[16:16 + C1, :]
        b2c = smallp_ref[24:24 + C2, :]
        g2 = smallp_ref[32:32 + C2, :]
        be2 = smallp_ref[40:40 + C2, :]
        b3c = smallp_ref[48:48 + C3, :]
        # Packed conv weight matrices: (24, 128).
        w1c = convw_ref[0:C1, 0:9]
        w2c = convw_ref[8:8 + C2, 0:9 * C1]
        w3c = convw_ref[16:16 + C3, 0:9 * C2]

        a0 = x_ref[...]                                               # (1, R)
        a1 = _conv_bn(a0, w1c, b1c, g1, be1, masks, bmask0, roll_sign)  # (4,R)
        a2 = _conv_bn(a1, w2c, b2c, g2, be2, masks, bmask0, roll_sign)  # (8,R)
        # batch_norm2 is reused for conv3, exactly as in the PyTorch module.
        a3 = _conv_bn(a2, w3c, b3c, g2, be2, masks, bmask0, roll_sign)  # (8,R)

        # PyTorch x.view(n, -1) channel-major flatten, materialized once into
        # the fc1-ready layout (K_STEPS, ROWS, KCHUNK); rows 2N..7 are zero.
        zero_pad = jnp.zeros((ROWS - 2 * N, KCHUNK), jnp.float32)
        for kc in range(K_STEPS):
            rows = []
            for s in range(2 * N):
                segs = [a3[kc * CHUNK_C + cl:kc * CHUNK_C + cl + 1,
                           s * HW:(s + 1) * HW] for cl in range(CHUNK_C)]
                rows.append(jnp.concatenate(segs, axis=1))        # (1, KCHUNK)
            slab = jnp.concatenate(rows + [zero_pad], axis=0)     # (ROWS, KCHUNK)
            y3_s[kc] = slab
        acc_s[...] = jnp.zeros_like(acc_s)

    # fc1 K-streaming: one fused MXU matmul per grid step against the streamed
    # fc1 weight chunk (w1k_ref is indexed by k via its BlockSpec).
    zk = y3_s[k]                                                   # (ROWS, KCHUNK)
    acc_s[...] += jnp.dot(zk, w1k_ref[...],
                          preferred_element_type=jnp.float32)      # (ROWS, HID)

    @pl.when(k == pl.num_programs(0) - 1)
    def _mlp_tail():
        b1f = fcb_ref[0:1, :]
        b2f = fcb_ref[1:2, :]
        b3f = fcb_ref[2:3, 0:OUTP]
        h1 = jnp.maximum(acc_s[...] + b1f, 0.0)                    # fc1 + ReLU
        h2 = jnp.maximum(
            jnp.dot(h1, w2f_ref[...], preferred_element_type=jnp.float32)
            + b2f, 0.0)                                            # fc2 + ReLU
        o_ref[...] = (jnp.dot(h2, w3f_ref[...],
                              preferred_element_type=jnp.float32)
                      + b3f)                                       # fc3 (padded)


def build_forward(roll_sign):
    kernel = functools.partial(siamese_kernel, roll_sign=roll_sign)

    @jax.jit
    def forward(input1, input2, prepped):
        convw, smallp, w1f, fcb, w2f, w3f = prepped

        # (2, N, 1, H, W) -> (1, 2*N*H*W): lane = branch*N*HW + n*HW + i*W + j
        x = jnp.stack([input1, input2], axis=0)
        x_r = jnp.transpose(x, (2, 0, 1, 3, 4)).reshape(1, R)

        grid_spec = pltpu.PrefetchScalarGridSpec(
            num_scalar_prefetch=0,
            grid=(K_STEPS,),
            in_specs=[
                pl.BlockSpec((1, R), lambda k: (0, 0)),            # x
                pl.BlockSpec((24, 128), lambda k: (0, 0)),         # conv weights
                pl.BlockSpec((56, 1), lambda k: (0, 0)),           # small params
                pl.BlockSpec((KCHUNK, HID), lambda k: (k, 0)),     # fc1 w (streamed)
                pl.BlockSpec((8, HID), lambda k: (0, 0)),          # fc biases
                pl.BlockSpec((HID, HID), lambda k: (0, 0)),        # fc2 w
                pl.BlockSpec((HID, OUTP), lambda k: (0, 0)),       # fc3 w (padded)
            ],
            out_specs=pl.BlockSpec((ROWS, OUTP), lambda k: (0, 0)),
            scratch_shapes=[
                pltpu.VMEM((K_STEPS, ROWS, KCHUNK), jnp.float32),  # flatten src
                pltpu.VMEM((ROWS, HID), jnp.float32),              # fc1 accumulator
            ])

        out = pl.pallas_call(
            kernel,
            out_shape=jax.ShapeDtypeStruct((ROWS, OUTP), jnp.float32),
            grid_spec=grid_spec,
            compiler_params=pltpu.CompilerParams(
                # Single sequential K axis: no megacore branch-parallelism
                # (it would double fc1_w HBM traffic on a BW-bound kernel).
                dimension_semantics=("arbitrary",),
                vmem_limit_bytes=32 * 1024 * 1024),
        )(x_r, convw, smallp, w1f, fcb, w2f, w3f)
        return out[0:N, 0:OUT], out[N:2 * N, 0:OUT]

    return forward


# ---------------------------------------------------------------------------
# pltpu.roll direction probe (makes the reflection taps robust to either
# rotation sign convention).
# ---------------------------------------------------------------------------
def _roll_probe_kernel(x_ref, o_ref):
    o_ref[...] = pltpu.roll(x_ref[...], 1, axis=1)


def _roll_shift_sign():
    x = lax.broadcasted_iota(jnp.float32, (8, 128), 1)
    y = pl.pallas_call(
        _roll_probe_kernel,
        out_shape=jax.ShapeDtypeStruct((8, 128), jnp.float32),
        in_specs=[pl.BlockSpec(memory_space=pltpu.MemorySpace.VMEM)],
        out_specs=pl.BlockSpec(memory_space=pltpu.MemorySpace.VMEM),
    )(x)
    # jnp.roll semantics: y[0, 1] == x[0, 0] == 0
    return 1 if float(y[0, 1]) == 0.0 else -1


# ---------------------------------------------------------------------------
# Parameters (PyTorch layout) + one-time conversion to kernel layout
# ---------------------------------------------------------------------------
def init_params(key, hidden=HID_RAW, out_dim=OUT):
    ks = jax.random.split(key, 12)
    f32 = jnp.float32

    def rnd(k, shape, scale=0.1):
        return (scale * jax.random.normal(k, shape)).astype(f32)

    flat_in = C3 * HW
    return {
        "conv1_w": rnd(ks[0], (C1, 1, 3, 3)), "conv1_b": rnd(ks[1], (C1,)),
        "conv2_w": rnd(ks[2], (C2, C1, 3, 3)), "conv2_b": rnd(ks[3], (C2,)),
        "conv3_w": rnd(ks[4], (C3, C2, 3, 3)), "conv3_b": rnd(ks[5], (C3,)),
        "bn1_g": jnp.ones((C1,), f32), "bn1_b": jnp.zeros((C1,), f32),
        "bn2_g": jnp.ones((C2,), f32), "bn2_b": jnp.zeros((C2,), f32),
        "fc1_w": rnd(ks[6], (flat_in, hidden), 0.02),
        "fc1_b": rnd(ks[7], (hidden,), 0.02),
        "fc2_w": rnd(ks[8], (hidden, hidden), 0.02),
        "fc2_b": rnd(ks[9], (hidden,), 0.02),
        "fc3_w": rnd(ks[10], (hidden, out_dim), 0.02),
        "fc3_b": rnd(ks[11], (out_dim,), 0.02),
    }


def prepare_params(p):
    """PyTorch layout -> kernel layout (done once, outside the hot path)."""
    f32 = jnp.float32
    pad_h = HID - HID_RAW

    def conv_mat(w):  # (Cout, Cin, 3, 3) -> (Cout, 9*Cin), cols ((kh, kw), ci)
        co, ci = w.shape[0], w.shape[1]
        return jnp.transpose(w, (0, 2, 3, 1)).reshape(co, 9 * ci).astype(f32)

    # Conv weight matrices packed into one (24, 128) array (1 DMA).
    convw = jnp.zeros((24, 128), f32)
    convw = convw.at[0:C1, 0:9].set(conv_mat(p["conv1_w"]))
    convw = convw.at[8:8 + C2, 0:9 * C1].set(conv_mat(p["conv2_w"]))
    convw = convw.at[16:16 + C3, 0:9 * C2].set(conv_mat(p["conv3_w"]))

    # Per-channel params packed into one (56, 1) array (1 DMA): param j lives
    # at rows [8j, 8j + Cout).
    smallp = jnp.zeros((56, 1), f32)
    packed = [(p["conv1_b"], C1), (p["bn1_g"], C1), (p["bn1_b"], C1),
              (p["conv2_b"], C2), (p["bn2_g"], C2), (p["bn2_b"], C2),
              (p["conv3_b"], C3)]
    for j, (v, n) in enumerate(packed):
        smallp = smallp.at[8 * j:8 * j + n, 0].set(v.astype(f32))

    w1f = jnp.pad(p["fc1_w"], ((0, 0), (0, pad_h))).astype(f32)       # (2048, HID)
    w2f = jnp.pad(p["fc2_w"], ((0, pad_h), (0, pad_h))).astype(f32)   # (HID, HID)
    w3f = jnp.pad(p["fc3_w"], ((0, pad_h), (0, OUTP - OUT))).astype(f32)  # (HID, 128)

    fcb = jnp.zeros((8, HID), f32)
    fcb = fcb.at[0, :].set(jnp.pad(p["fc1_b"], (0, pad_h)).astype(f32))
    fcb = fcb.at[1, :].set(jnp.pad(p["fc2_b"], (0, pad_h)).astype(f32))
    fcb = fcb.at[2, 0:OUT].set(p["fc3_b"].astype(f32))

    return (convw, smallp, w1f, fcb, w2f, w3f)


# ---------------------------------------------------------------------------
# Pure-JAX reference (the PyTorch module semantics) for a correctness check
# ---------------------------------------------------------------------------
def _reference_branch(x, p):
    hp = lax.Precision.HIGHEST

    def conv_bn(x, w, b, g, be):
        xp = jnp.pad(x, ((0, 0), (0, 0), (1, 1), (1, 1)), mode="reflect")
        y = lax.conv_general_dilated(
            xp, w, (1, 1), "VALID",
            dimension_numbers=("NCHW", "OIHW", "NCHW"), precision=hp)
        y = jnp.maximum(y + b.reshape(1, -1, 1, 1), 0.0)
        mean = jnp.mean(y, axis=(0, 2, 3), keepdims=True)
        var = jnp.mean((y - mean) ** 2, axis=(0, 2, 3), keepdims=True)
        y = (y - mean) * lax.rsqrt(var + EPS)
        return g.reshape(1, -1, 1, 1) * y + be.reshape(1, -1, 1, 1)

    x = conv_bn(x, p["conv1_w"], p["conv1_b"], p["bn1_g"], p["bn1_b"])
    x = conv_bn(x, p["conv2_w"], p["conv2_b"], p["bn2_g"], p["bn2_b"])
    x = conv_bn(x, p["conv3_w"], p["conv3_b"], p["bn2_g"], p["bn2_b"])
    flat = x.reshape(x.shape[0], -1)
    h = jnp.maximum(jnp.dot(flat, p["fc1_w"], precision=hp) + p["fc1_b"], 0.0)
    h = jnp.maximum(jnp.dot(h, p["fc2_w"], precision=hp) + p["fc2_b"], 0.0)
    return jnp.dot(h, p["fc3_w"], precision=hp) + p["fc3_b"]


if __name__ == "__main__":
    key = jax.random.PRNGKey(0)
    k1, k2, kp = jax.random.split(key, 3)
    input1 = jax.random.normal(k1, (N, 1, H, W), dtype=jnp.float32)
    input2 = jax.random.normal(k2, (N, 1, H, W), dtype=jnp.float32)
    params = init_params(kp)
    prepped = prepare_params(params)

    roll_sign = _roll_shift_sign()
    forward = build_forward(roll_sign)

    out1, out2 = forward(input1, input2, prepped)
    jax.block_until_ready((out1, out2))
    assert out1.shape == (N, OUT) and out2.shape == (N, OUT)

    ref1 = _reference_branch(input1, params)
    ref2 = _reference_branch(input2, params)
    ok = (np.allclose(np.asarray(out1), np.asarray(ref1), atol=1e-2, rtol=1e-2)
          and np.allclose(np.asarray(out2), np.asarray(ref2), atol=1e-2, rtol=1e-2))
    if not ok:
        raise AssertionError("Pallas SiameseNetwork output mismatch vs JAX reference")
    print("KERNEL_OK")
</pallas_src>

<mosaic_0001>
module attributes {stable_mosaic.version = 11 : i64} {
  func.func @_roll_probe_kernel(%arg0: memref<8x128xf32, #tpu.memory_space<vmem>>, %arg1: memref<8x128xf32, #tpu.memory_space<vmem>>) attributes {dimension_semantics = [], scalar_prefetch = 0 : i64, scratch_operands = 0 : i64, tpu.core_type = #tpu.core_type<tc>} {
    %c0 = arith.constant 0 : index
    %c0_0 = arith.constant 0 : index
    %0 = vector.load %arg0[%c0, %c0_0] : memref<8x128xf32, #tpu.memory_space<vmem>>, vector<8x128xf32>
    %c1_i32 = arith.constant 1 : i32
    %1 = tpu.dynamic_rotate %0 by %c1_i32 dim 1 : vector<8x128xf32>, i32 -> vector<8x128xf32>
    %c0_1 = arith.constant 0 : index
    %c0_2 = arith.constant 0 : index
    %2 = vector.load %arg1[%c0_1, %c0_2] : memref<8x128xf32, #tpu.memory_space<vmem>>, vector<8x128xf32>
    tpu.vector_store %arg1[%c0_1, %c0_2], %1 {strides = array<i32>} : memref<8x128xf32, #tpu.memory_space<vmem>>, vector<8x128xf32>,
    return
  }
}

</mosaic_0001>

<llo_original>
// kernel: tpu_custom_call.1
$region0: #{tpu_custom_call.1}
  #allocation0 [shape = 'u32[]', space=smem, size = 0x4, offset = 0x4, fixed_abs, tag = 'smem constant byte address 0x4 - core index']
  #allocation1 [shape = 'u32[144,128]{1,0:T(1,128)}', space=vmem, size = 0x12000, scoped, tag = 'internal scratch']
  %s0 = inlined_call_operand.hbm [shape: f32[8,128], index: 0, kind: input, shape index: {}]
  %s1 = inlined_call_operand.hbm [shape: f32[8,128], index: 1, kind: output, shape index: {}]
  %s2 = sld [smem:[#allocation0]]
  $region18: #{tpu_custom_call.1} parent=0
    _
  %s4 = ssub.s32 1, %s2
  %s5 = scalar_select 0, %s4, %s2
  $region1: #{tpu_custom_call.1} parent=0
    #allocation2 [shape = 'u8[4096]{0}', space=vmem, size = 0x1000, scoped, tag = 'input window, operand 0, single buffered']
    #allocation3 [shape = 's32[1]{0}', space=sflag, size = 0x4, scoped, tag = 'scoped memory for tpu_custom_call.1']
    #allocation4 [shape = 's32[1]{0}', space=sflag, size = 0x4, scoped, tag = 'scoped memory for tpu_custom_call.1']
    #allocation5 [shape = 'u8[4096]{0}', space=vmem, size = 0x1000, scoped, tag = 'output window, operand 0, single buffered']
    %6 = vsyncpa [#allocation3], 0
    %7 = vsyncpa [#allocation4], 0
    // Predicated region
    $region2: #{tpu_custom_call.1} parent=1 // pred_check
      _
    $region3: #{tpu_custom_call.1} parent=1 // pred_check_branch
      %9 = sbr.rel (0) target = $region5
    $region4: #{tpu_custom_call.1} parent=1 // pred_region
      %s11 = ssub.s32 128, 128
      %12 = vsyncadd [#allocation3], %s11
      %s14 = sshll.u32 [#allocation2], 4
      %s15 = int_to_ptr.vmem [resolvable:$true] %s14
      %17 = dma.hbm_to_vmem [thread:$0]  %s0, 128, %s15, [#allocation3]
    $region5: #{tpu_custom_call.1} parent=1 // pred_fallthru
      _
    // Predicated region
    $region6: #{tpu_custom_call.1} parent=1 // pred_check
      _
    $region7: #{tpu_custom_call.1} parent=1 // pred_check_branch
      %19 = sbr.rel (0) target = $region9
    $region8: #{tpu_custom_call.1} parent=1 // pred_region
      %20 = dma.done [#allocation3], 128
    $region9: #{tpu_custom_call.1} parent=1 // pred_fallthru
      _
    %v21 = vld [vmem:[#allocation2] sm:$0xff]
    %22 = vrot.lane.b32.xlu0 %v21, 1
    %v23 = vpop.permute.xlu0 %22
    %24 = vst [vmem:[#allocation5] sm:$0xff] %v23
    // Predicated region
    $region10: #{tpu_custom_call.1} parent=1 // pred_check
      _
    $region11: #{tpu_custom_call.1} parent=1 // pred_check_branch
      %26 = sbr.rel (0) target = $region13
    $region12: #{tpu_custom_call.1} parent=1 // pred_region
      %s28 = ssub.s32 128, 128
      %29 = vsyncadd [#allocation4], %s28
      %s31 = sshll.u32 [#allocation5], 4
      %s32 = int_to_ptr.vmem [resolvable:$true] %s31
      %34 = dma.vmem_to_hbm [thread:$0]  %s32, 128, %s1, [#allocation4]
    $region13: #{tpu_custom_call.1} parent=1 // pred_fallthru
      _
    // Predicated region
    $region14: #{tpu_custom_call.1} parent=1 // pred_check
      _
    $region15: #{tpu_custom_call.1} parent=1 // pred_check_branch
      %36 = sbr.rel (0) target = $region17
    $region16: #{tpu_custom_call.1} parent=1 // pred_region
      %37 = dma.done [#allocation4], 128
    $region17: #{tpu_custom_call.1} parent=1 // pred_fallthru
      _
    %38 = vsyncpa [#allocation3], 1
    %39 = vsyncpa [#allocation4], 1

</llo_original>
